<compile_context>
chip_gen: v6e
topology: v6e:2x2x1
jax: 0.10.0
libtpu: 0.0.40
codegen_flags: <defaults>
</compile_context>

<pallas_src>
import functools

import jax
import jax.numpy as jnp
from jax import lax
from jax.experimental import pallas as pl
from jax.experimental.pallas import tpu as pltpu


PAD = 32  # lane padding for packed weights/biases (>= max(nx, 20, outsize))


def _round_up(a, m):
    return ((a + m - 1) // m) * m


# ----------------------------------------------------------------------------
# SoftExponential
# ----------------------------------------------------------------------------
def _soft_exponential_kernel(x, alpha):
    """SoftExponential inside the kernel. `alpha` is a traced f32 scalar (from SMEM).

    Gated with lax.cond so the transcendental path is skipped entirely when
    alpha == 0.0 (the neuromancer default init)."""

    def _identity(v):
        return v

    def _nonzero(v):
        def _neg(u):
            inv_a = 1.0 / alpha
            # NOTE: clamp keeps log() in-domain for padded/garbage lanes; PyTorch would
            # produce NaN/-inf for 1 - a*(x+a) <= 0 (only reachable for learned a < 0).
            return -jnp.log(jnp.maximum(1.0 - alpha * (u + alpha), 1e-30)) * inv_a

        def _pos(u):
            inv_a = 1.0 / alpha
            return (jnp.exp(alpha * u) - 1.0) * inv_a + alpha

        return lax.cond(alpha < 0.0, _neg, _pos, v)

    return lax.cond(alpha == 0.0, _identity, _nonzero, x)


def _soft_exponential_ref(x, alpha):
    """Pure-jnp reference (independent implementation, used for validation)."""
    safe_a = jnp.where(alpha == 0.0, 1.0, alpha)
    neg = -jnp.log(jnp.maximum(1.0 - safe_a * (x + safe_a), 1e-30)) / safe_a
    pos = (jnp.exp(safe_a * x) - 1.0) / safe_a + safe_a
    return jnp.where(alpha == 0.0, x, jnp.where(alpha < 0.0, neg, pos))


# ----------------------------------------------------------------------------
# Parameters
# ----------------------------------------------------------------------------
def init_policy_params(key, nx, outsize, hsizes=(20, 20, 20)):
    """torch.nn.Linear-style init (U(-1/sqrt(fan_in), 1/sqrt(fan_in))).

    Weights stored pre-transposed as [in, out] so the kernel computes h @ W + b,
    matching PyTorch's x @ W_pt.T + b exactly."""
    insize = 2 * nx
    sizes = [insize] + list(hsizes) + [outsize]
    params = {}
    keys = jax.random.split(key, 2 * (len(sizes) - 1))
    for i in range(len(sizes) - 1):
        fan_in, fan_out = sizes[i], sizes[i + 1]
        bound = 1.0 / jnp.sqrt(jnp.float32(fan_in))
        params[f"w{i}"] = jax.random.uniform(
            keys[2 * i], (fan_in, fan_out), jnp.float32, -bound, bound)
        params[f"b{i}"] = jax.random.uniform(
            keys[2 * i + 1], (1, fan_out), jnp.float32, -bound, bound)
    params["alphas"] = jnp.zeros((len(hsizes),), jnp.float32)   # SoftExponential alpha
    return params


def pack_params(params, nx, pad=PAD):
    """Pack weights/biases into two zero-padded resident buffers (host-side, once).

    Weights: (5, pad, pad) with slots [W0_x, W0_R, W1, W2, W3]; W0 is split so that
    both layer-0 ref slices start at sublane 0 (tile-aligned static slices).
    Biases:  (4, 1, pad) with slots [b0, b1, b2, b3].
    Zero padding is matmul-safe: padded rows/cols are 0, so garbage in padded
    activation lanes never propagates into real outputs."""
    w0 = params["w0"].astype(jnp.float32)
    w_list = [w0[:nx], w0[nx:]] + [params[f"w{i}"].astype(jnp.float32) for i in (1, 2, 3)]
    b_list = [params[f"b{i}"].astype(jnp.float32) for i in range(4)]
    ws, bs = [], []
    for w in w_list:
        assert w.shape[0] <= pad and w.shape[1] <= pad
        ws.append(jnp.zeros((pad, pad), jnp.float32).at[: w.shape[0], : w.shape[1]].set(w))
    for b in b_list:
        assert b.shape[1] <= pad
        bs.append(jnp.zeros((1, pad), jnp.float32).at[:, : b.shape[1]].set(b))
    return jnp.stack(ws), jnp.stack(bs)


# ----------------------------------------------------------------------------
# Pallas kernel + wrapper
# ----------------------------------------------------------------------------
def _policy_kernel(alphas_ref,            # SMEM (3,) f32
                   x_ref,                 # VMEM (BM, nx) f32   pipelined
                   r_ref,                 # VMEM (BM, nx) f32   pipelined
                   w_ref,                 # VMEM (5, P, P) f32, zero-padded, resident
                   b_ref,                 # VMEM (4, 1, P) f32, zero-padded, resident
                   o_ref,                 # VMEM (BM, outsize) f32
                   *, nx):
    f32 = jnp.float32
    outsize = o_ref.shape[1]

    # Layer 0: concat([x, R]) @ W0 + b0 computed as two small dots (no wrapper concat).
    # Ref slices are static and start at sublane 0 (W0 was split host-side).
    h = (jnp.dot(x_ref[...], w_ref[0, :nx, :], preferred_element_type=f32)
         + jnp.dot(r_ref[...], w_ref[1, :nx, :], preferred_element_type=f32)
         + b_ref[0])
    h = _soft_exponential_kernel(h, alphas_ref[0])
    # Layer 1
    h = jnp.dot(h, w_ref[2], preferred_element_type=f32) + b_ref[1]
    h = _soft_exponential_kernel(h, alphas_ref[1])
    # Layer 2
    h = jnp.dot(h, w_ref[3], preferred_element_type=f32) + b_ref[2]
    h = _soft_exponential_kernel(h, alphas_ref[2])
    # Output layer (identity nonlinearity, as in the neuromancer MLP).
    # Slice the weight/bias refs to `outsize` so only the needed columns are produced
    # and written back (no padded writeback, no wrapper-side slice).
    out = (jnp.dot(h, w_ref[4, :, :outsize], preferred_element_type=f32)
           + b_ref[3, :, :outsize])
    o_ref[...] = out.astype(o_ref.dtype)


def _choose_bm(batch, block_batch):
    """Pick a batch tile: multiple of 8, <= block_batch, and (when batch allows)
    small enough that the grid has >= 2 blocks so the 'parallel' axis can shard
    across v7x's two TensorCores."""
    if batch <= 8:
        return 8
    bm = min(block_batch, _round_up(pl.cdiv(batch, 2), 8))
    return max(bm, 8)


def policy_forward(x, R, alphas, w_packed, b_packed, outsize, *, block_batch=4096):
    """x: [B, nx], R: [B, nx] -> [B, outsize]."""
    B, nx = x.shape
    assert R.shape == (B, nx)
    NW, P, _ = w_packed.shape
    NB = b_packed.shape[0]

    x = x.astype(jnp.float32)
    R = R.astype(jnp.float32)

    BM = _choose_bm(B, block_batch)
    grid = (pl.cdiv(B, BM),)   # ragged last block handled by Pallas (rows independent)

    kernel = functools.partial(_policy_kernel, nx=nx)

    return pl.pallas_call(
        kernel,
        out_shape=jax.ShapeDtypeStruct((B, outsize), jnp.float32),
        grid=grid,
        in_specs=[
            pl.BlockSpec(memory_space=pltpu.MemorySpace.SMEM),        # alphas (3,)
            pl.BlockSpec((BM, nx), lambda i: (i, 0)),                 # x, pipelined
            pl.BlockSpec((BM, nx), lambda i: (i, 0)),                 # R, pipelined
            pl.BlockSpec((NW, P, P), lambda i: (0, 0, 0)),            # weights, resident
            pl.BlockSpec((NB, 1, P), lambda i: (0, 0, 0)),            # biases, resident
        ],
        out_specs=pl.BlockSpec((BM, outsize), lambda i: (i, 0)),
        compiler_params=pltpu.CompilerParams(
            dimension_semantics=("parallel",)),                       # megacore on v7x
    )(alphas, x, R, w_packed, b_packed)


# ----------------------------------------------------------------------------
# Pure-JAX reference of the PyTorch forward (for validation)
# ----------------------------------------------------------------------------
def policy_reference(x, R, params):
    h = jnp.concatenate([x, R], axis=-1)
    for i in range(3):
        h = h @ params[f"w{i}"] + params[f"b{i}"]
        h = _soft_exponential_ref(h, params["alphas"][i])
    return h @ params["w3"] + params["b3"]


if __name__ == "__main__":
    key = jax.random.PRNGKey(0)
    k_param, k_x, k_r, k_x2, k_r2 = jax.random.split(key, 5)

    nx = 4            # state dim  -> insize = 2 * nx = 8
    outsize = 2       # control dim
    batch = 8

    params = init_policy_params(k_param, nx, outsize, hsizes=(20, 20, 20))
    w_packed, b_packed = pack_params(params, nx)

    x = jax.random.normal(k_x, (batch, nx), jnp.float32)
    R = jax.random.normal(k_r, (batch, nx), jnp.float32)

    # Default alphas (all zero -> identity nonlinearity path)
    out = policy_forward(x, R, params["alphas"], w_packed, b_packed, outsize)
    out = jax.block_until_ready(out)
    ref = policy_reference(x, R, params)
    assert out.shape == (batch, outsize)
    assert jnp.allclose(out, ref, atol=1e-4, rtol=1e-3), "mismatch (alpha == 0 path)"

    # Exercise the non-identity SoftExponential branches (positive and negative alpha)
    alphas2 = jnp.array([0.5, -0.3, 0.25], jnp.float32)
    params2 = dict(params, alphas=alphas2)
    out2 = jax.block_until_ready(
        policy_forward(x, R, alphas2, w_packed, b_packed, outsize))
    ref2 = policy_reference(x, R, params2)
    assert jnp.allclose(out2, ref2, atol=1e-4, rtol=1e-3), "mismatch (alpha != 0 path)"

    # Multi-block grid + ragged last block (exercises >=2 grid steps / OOB-row masking)
    batch3 = 20
    x3 = jax.random.normal(k_x2, (batch3, nx), jnp.float32)
    R3 = jax.random.normal(k_r2, (batch3, nx), jnp.float32)
    out3 = jax.block_until_ready(
        policy_forward(x3, R3, params["alphas"], w_packed, b_packed, outsize))
    ref3 = policy_reference(x3, R3, params)
    assert out3.shape == (batch3, outsize)
    assert jnp.allclose(out3, ref3, atol=1e-4, rtol=1e-3), "mismatch (multi-block path)"

    print("KERNEL_OK")
</pallas_src>

<mosaic_0001>
module attributes {stable_mosaic.version = 11 : i64} {
  func.func @_policy_kernel(%arg0: i32, %arg1: memref<3xf32, #tpu.memory_space<smem>>, %arg2: memref<8x4xf32, #tpu.memory_space<vmem>>, %arg3: memref<8x4xf32, #tpu.memory_space<vmem>>, %arg4: memref<5x32x32xf32, #tpu.memory_space<vmem>>, %arg5: memref<4x1x32xf32, #tpu.memory_space<vmem>>, %arg6: memref<8x2xf32, #tpu.memory_space<vmem>>) attributes {dimension_semantics = [#tpu.dimension_semantics<parallel>], iteration_bounds = array<i64: 1>, scalar_prefetch = 0 : i64, scratch_operands = 0 : i64, tpu.core_type = #tpu.core_type<tc>, window_params = [{transform_indices = @transform_0, window_bounds = array<i64: 3>}, {transform_indices = @transform_1, window_bounds = array<i64: 8, 4>}, {transform_indices = @transform_2, window_bounds = array<i64: 8, 4>}, {pipeline_mode = #tpu.pipeline_mode<synchronous>, transform_indices = @transform_3, window_bounds = array<i64: 5, 32, 32>}, {pipeline_mode = #tpu.pipeline_mode<synchronous>, transform_indices = @transform_4, window_bounds = array<i64: 4, 1, 32>}, {transform_indices = @transform_5, window_bounds = array<i64: 8, 2>}]} {
    %c0 = arith.constant 0 : index
    %c0_0 = arith.constant 0 : index
    %0 = vector.load %arg2[%c0, %c0_0] : memref<8x4xf32, #tpu.memory_space<vmem>>, vector<8x4xf32>
    %c0_1 = arith.constant 0 : index
    %c0_2 = arith.constant 0 : index
    %c0_3 = arith.constant 0 : index
    %1 = vector.load %arg4[%c0_1, %c0_2, %c0_3] : memref<5x32x32xf32, #tpu.memory_space<vmem>>, vector<1x4x32xf32>
    %2 = vector.shape_cast %1 : vector<1x4x32xf32> to vector<4x32xf32>
    %cst = arith.constant dense<0.000000e+00> : vector<8x32xf32>
    %3 = tpu.matmul %0, %2, %cst {dimension_numbers = #tpu.dot_dimension_numbers<[1], [0], [0], [1], [0, 0, 1, 1], [], []>} : vector<8x4xf32>, vector<4x32xf32>, vector<8x32xf32> -> vector<8x32xf32>
    %c0_4 = arith.constant 0 : index
    %c0_5 = arith.constant 0 : index
    %4 = vector.load %arg3[%c0_4, %c0_5] : memref<8x4xf32, #tpu.memory_space<vmem>>, vector<8x4xf32>
    %c1 = arith.constant 1 : index
    %c0_6 = arith.constant 0 : index
    %c0_7 = arith.constant 0 : index
    %5 = vector.load %arg4[%c1, %c0_6, %c0_7] : memref<5x32x32xf32, #tpu.memory_space<vmem>>, vector<1x4x32xf32>
    %6 = vector.shape_cast %5 : vector<1x4x32xf32> to vector<4x32xf32>
    %cst_8 = arith.constant dense<0.000000e+00> : vector<8x32xf32>
    %7 = tpu.matmul %4, %6, %cst_8 {dimension_numbers = #tpu.dot_dimension_numbers<[1], [0], [0], [1], [0, 0, 1, 1], [], []>} : vector<8x4xf32>, vector<4x32xf32>, vector<8x32xf32> -> vector<8x32xf32>
    %8 = arith.addf %3, %7 : vector<8x32xf32>
    %c0_9 = arith.constant 0 : index
    %c0_10 = arith.constant 0 : index
    %c0_11 = arith.constant 0 : index
    %9 = vector.load %arg5[%c0_9, %c0_10, %c0_11] : memref<4x1x32xf32, #tpu.memory_space<vmem>>, vector<1x1x32xf32>
    %10 = vector.shape_cast %9 : vector<1x1x32xf32> to vector<1x32xf32>
    %11 = vector.broadcast %10 : vector<1x32xf32> to vector<8x32xf32>
    %12 = arith.addf %8, %11 : vector<8x32xf32>
    %c0_12 = arith.constant 0 : index
    %13 = memref.load %arg1[%c0_12] : memref<3xf32, #tpu.memory_space<smem>>
    %cst_13 = arith.constant 0.000000e+00 : f32
    %14 = arith.cmpf oeq, %13, %cst_13 : f32
    %15 = arith.extui %14 : i1 to i32
    %c0_i32 = arith.constant 0 : i32
    %16 = arith.cmpi ne, %15, %c0_i32 : i32
    %17 = scf.if %16 -> (vector<8x32xf32>) {
      scf.yield %12 : vector<8x32xf32>
    } else {
      %cst_40 = arith.constant 0.000000e+00 : f32
      %50 = arith.cmpf olt, %13, %cst_40 : f32
      %51 = arith.extui %50 : i1 to i32
      %c0_i32_41 = arith.constant 0 : i32
      %52 = arith.cmpi ne, %51, %c0_i32_41 : i32
      %53 = scf.if %52 -> (vector<8x32xf32>) {
        %cst_42 = arith.constant 1.000000e+00 : f32
        %54 = arith.divf %cst_42, %13 : f32
        %55 = vector.broadcast %13 : f32 to vector<8x32xf32>
        %56 = arith.addf %12, %55 : vector<8x32xf32>
        %57 = vector.broadcast %13 : f32 to vector<8x32xf32>
        %58 = arith.mulf %57, %56 : vector<8x32xf32>
        %cst_43 = arith.constant 1.000000e+00 : f32
        %59 = vector.broadcast %cst_43 : f32 to vector<8x32xf32>
        %60 = arith.subf %59, %58 : vector<8x32xf32>
        %cst_44 = arith.constant 1.000000e-30 : f32
        %61 = vector.broadcast %cst_44 : f32 to vector<8x32xf32>
        %62 = arith.maximumf %60, %61 : vector<8x32xf32>
        %63 = math.log %62 : vector<8x32xf32>
        %cst_45 = arith.constant 0.000000e+00 : f32
        %64 = vector.broadcast %cst_45 : f32 to vector<8x32xf32>
        %65 = arith.subf %64, %63 : vector<8x32xf32>
        %66 = vector.broadcast %54 : f32 to vector<8x32xf32>
        %67 = arith.mulf %65, %66 : vector<8x32xf32>
        scf.yield %67 : vector<8x32xf32>
      } else {
        %cst_42 = arith.constant 1.000000e+00 : f32
        %54 = arith.divf %cst_42, %13 : f32
        %55 = vector.broadcast %13 : f32 to vector<8x32xf32>
        %56 = arith.mulf %55, %12 : vector<8x32xf32>
        %57 = math.exp %56 : vector<8x32xf32>
        %cst_43 = arith.constant 1.000000e+00 : f32
        %58 = vector.broadcast %cst_43 : f32 to vector<8x32xf32>
        %59 = arith.subf %57, %58 : vector<8x32xf32>
        %60 = vector.broadcast %54 : f32 to vector<8x32xf32>
        %61 = arith.mulf %59, %60 : vector<8x32xf32>
        %62 = vector.broadcast %13 : f32 to vector<8x32xf32>
        %63 = arith.addf %61, %62 : vector<8x32xf32>
        scf.yield %63 : vector<8x32xf32>
      }
      scf.yield %53 : vector<8x32xf32>
    }
    %c2 = arith.constant 2 : index
    %c0_14 = arith.constant 0 : index
    %c0_15 = arith.constant 0 : index
    %18 = vector.load %arg4[%c2, %c0_14, %c0_15] : memref<5x32x32xf32, #tpu.memory_space<vmem>>, vector<1x32x32xf32>
    %19 = vector.shape_cast %18 : vector<1x32x32xf32> to vector<32x32xf32>
    %cst_16 = arith.constant dense<0.000000e+00> : vector<8x32xf32>
    %20 = tpu.matmul %17, %19, %cst_16 {dimension_numbers = #tpu.dot_dimension_numbers<[1], [0], [0], [1], [0, 0, 1, 1], [], []>} : vector<8x32xf32>, vector<32x32xf32>, vector<8x32xf32> -> vector<8x32xf32>
    %c1_17 = arith.constant 1 : index
    %c0_18 = arith.constant 0 : index
    %c0_19 = arith.constant 0 : index
    %21 = vector.load %arg5[%c1_17, %c0_18, %c0_19] : memref<4x1x32xf32, #tpu.memory_space<vmem>>, vector<1x1x32xf32>
    %22 = vector.shape_cast %21 : vector<1x1x32xf32> to vector<1x32xf32>
    %23 = vector.broadcast %22 : vector<1x32xf32> to vector<8x32xf32>
    %24 = arith.addf %20, %23 : vector<8x32xf32>
    %c1_20 = arith.constant 1 : index
    %25 = memref.load %arg1[%c1_20] : memref<3xf32, #tpu.memory_space<smem>>
    %cst_21 = arith.constant 0.000000e+00 : f32
    %26 = arith.cmpf oeq, %25, %cst_21 : f32
    %27 = arith.extui %26 : i1 to i32
    %c0_i32_22 = arith.constant 0 : i32
    %28 = arith.cmpi ne, %27, %c0_i32_22 : i32
    %29 = scf.if %28 -> (vector<8x32xf32>) {
      scf.yield %24 : vector<8x32xf32>
    } else {
      %cst_40 = arith.constant 0.000000e+00 : f32
      %50 = arith.cmpf olt, %25, %cst_40 : f32
      %51 = arith.extui %50 : i1 to i32
      %c0_i32_41 = arith.constant 0 : i32
      %52 = arith.cmpi ne, %51, %c0_i32_41 : i32
      %53 = scf.if %52 -> (vector<8x32xf32>) {
        %cst_42 = arith.constant 1.000000e+00 : f32
        %54 = arith.divf %cst_42, %25 : f32
        %55 = vector.broadcast %25 : f32 to vector<8x32xf32>
        %56 = arith.addf %24, %55 : vector<8x32xf32>
        %57 = vector.broadcast %25 : f32 to vector<8x32xf32>
        %58 = arith.mulf %57, %56 : vector<8x32xf32>
        %cst_43 = arith.constant 1.000000e+00 : f32
        %59 = vector.broadcast %cst_43 : f32 to vector<8x32xf32>
        %60 = arith.subf %59, %58 : vector<8x32xf32>
        %cst_44 = arith.constant 1.000000e-30 : f32
        %61 = vector.broadcast %cst_44 : f32 to vector<8x32xf32>
        %62 = arith.maximumf %60, %61 : vector<8x32xf32>
        %63 = math.log %62 : vector<8x32xf32>
        %cst_45 = arith.constant 0.000000e+00 : f32
        %64 = vector.broadcast %cst_45 : f32 to vector<8x32xf32>
        %65 = arith.subf %64, %63 : vector<8x32xf32>
        %66 = vector.broadcast %54 : f32 to vector<8x32xf32>
        %67 = arith.mulf %65, %66 : vector<8x32xf32>
        scf.yield %67 : vector<8x32xf32>
      } else {
        %cst_42 = arith.constant 1.000000e+00 : f32
        %54 = arith.divf %cst_42, %25 : f32
        %55 = vector.broadcast %25 : f32 to vector<8x32xf32>
        %56 = arith.mulf %55, %24 : vector<8x32xf32>
        %57 = math.exp %56 : vector<8x32xf32>
        %cst_43 = arith.constant 1.000000e+00 : f32
        %58 = vector.broadcast %cst_43 : f32 to vector<8x32xf32>
        %59 = arith.subf %57, %58 : vector<8x32xf32>
        %60 = vector.broadcast %54 : f32 to vector<8x32xf32>
        %61 = arith.mulf %59, %60 : vector<8x32xf32>
        %62 = vector.broadcast %25 : f32 to vector<8x32xf32>
        %63 = arith.addf %61, %62 : vector<8x32xf32>
        scf.yield %63 : vector<8x32xf32>
      }
      scf.yield %53 : vector<8x32xf32>
    }
    %c3 = arith.constant 3 : index
    %c0_23 = arith.constant 0 : index
    %c0_24 = arith.constant 0 : index
    %30 = vector.load %arg4[%c3, %c0_23, %c0_24] : memref<5x32x32xf32, #tpu.memory_space<vmem>>, vector<1x32x32xf32>
    %31 = vector.shape_cast %30 : vector<1x32x32xf32> to vector<32x32xf32>
    %cst_25 = arith.constant dense<0.000000e+00> : vector<8x32xf32>
    %32 = tpu.matmul %29, %31, %cst_25 {dimension_numbers = #tpu.dot_dimension_numbers<[1], [0], [0], [1], [0, 0, 1, 1], [], []>} : vector<8x32xf32>, vector<32x32xf32>, vector<8x32xf32> -> vector<8x32xf32>
    %c2_26 = arith.constant 2 : index
    %c0_27 = arith.constant 0 : index
    %c0_28 = arith.constant 0 : index
    %33 = vector.load %arg5[%c2_26, %c0_27, %c0_28] : memref<4x1x32xf32, #tpu.memory_space<vmem>>, vector<1x1x32xf32>
    %34 = vector.shape_cast %33 : vector<1x1x32xf32> to vector<1x32xf32>
    %35 = vector.broadcast %34 : vector<1x32xf32> to vector<8x32xf32>
    %36 = arith.addf %32, %35 : vector<8x32xf32>
    %c2_29 = arith.constant 2 : index
    %37 = memref.load %arg1[%c2_29] : memref<3xf32, #tpu.memory_space<smem>>
    %cst_30 = arith.constant 0.000000e+00 : f32
    %38 = arith.cmpf oeq, %37, %cst_30 : f32
    %39 = arith.extui %38 : i1 to i32
    %c0_i32_31 = arith.constant 0 : i32
    %40 = arith.cmpi ne, %39, %c0_i32_31 : i32
    %41 = scf.if %40 -> (vector<8x32xf32>) {
      scf.yield %36 : vector<8x32xf32>
    } else {
      %cst_40 = arith.constant 0.000000e+00 : f32
      %50 = arith.cmpf olt, %37, %cst_40 : f32
      %51 = arith.extui %50 : i1 to i32
      %c0_i32_41 = arith.constant 0 : i32
      %52 = arith.cmpi ne, %51, %c0_i32_41 : i32
      %53 = scf.if %52 -> (vector<8x32xf32>) {
        %cst_42 = arith.constant 1.000000e+00 : f32
        %54 = arith.divf %cst_42, %37 : f32
        %55 = vector.broadcast %37 : f32 to vector<8x32xf32>
        %56 = arith.addf %36, %55 : vector<8x32xf32>
        %57 = vector.broadcast %37 : f32 to vector<8x32xf32>
        %58 = arith.mulf %57, %56 : vector<8x32xf32>
        %cst_43 = arith.constant 1.000000e+00 : f32
        %59 = vector.broadcast %cst_43 : f32 to vector<8x32xf32>
        %60 = arith.subf %59, %58 : vector<8x32xf32>
        %cst_44 = arith.constant 1.000000e-30 : f32
        %61 = vector.broadcast %cst_44 : f32 to vector<8x32xf32>
        %62 = arith.maximumf %60, %61 : vector<8x32xf32>
        %63 = math.log %62 : vector<8x32xf32>
        %cst_45 = arith.constant 0.000000e+00 : f32
        %64 = vector.broadcast %cst_45 : f32 to vector<8x32xf32>
        %65 = arith.subf %64, %63 : vector<8x32xf32>
        %66 = vector.broadcast %54 : f32 to vector<8x32xf32>
        %67 = arith.mulf %65, %66 : vector<8x32xf32>
        scf.yield %67 : vector<8x32xf32>
      } else {
        %cst_42 = arith.constant 1.000000e+00 : f32
        %54 = arith.divf %cst_42, %37 : f32
        %55 = vector.broadcast %37 : f32 to vector<8x32xf32>
        %56 = arith.mulf %55, %36 : vector<8x32xf32>
        %57 = math.exp %56 : vector<8x32xf32>
        %cst_43 = arith.constant 1.000000e+00 : f32
        %58 = vector.broadcast %cst_43 : f32 to vector<8x32xf32>
        %59 = arith.subf %57, %58 : vector<8x32xf32>
        %60 = vector.broadcast %54 : f32 to vector<8x32xf32>
        %61 = arith.mulf %59, %60 : vector<8x32xf32>
        %62 = vector.broadcast %37 : f32 to vector<8x32xf32>
        %63 = arith.addf %61, %62 : vector<8x32xf32>
        scf.yield %63 : vector<8x32xf32>
      }
      scf.yield %53 : vector<8x32xf32>
    }
    %c4 = arith.constant 4 : index
    %c0_32 = arith.constant 0 : index
    %c0_33 = arith.constant 0 : index
    %42 = vector.load %arg4[%c4, %c0_32, %c0_33] : memref<5x32x32xf32, #tpu.memory_space<vmem>>, vector<1x32x2xf32>
    %43 = vector.shape_cast %42 : vector<1x32x2xf32> to vector<32x2xf32>
    %cst_34 = arith.constant dense<0.000000e+00> : vector<8x2xf32>
    %44 = tpu.matmul %41, %43, %cst_34 {dimension_numbers = #tpu.dot_dimension_numbers<[1], [0], [0], [1], [0, 0, 1, 1], [], []>} : vector<8x32xf32>, vector<32x2xf32>, vector<8x2xf32> -> vector<8x2xf32>
    %c3_35 = arith.constant 3 : index
    %c0_36 = arith.constant 0 : index
    %c0_37 = arith.constant 0 : index
    %45 = vector.load %arg5[%c3_35, %c0_36, %c0_37] : memref<4x1x32xf32, #tpu.memory_space<vmem>>, vector<1x1x2xf32>
    %46 = vector.shape_cast %45 : vector<1x1x2xf32> to vector<1x2xf32>
    %47 = vector.broadcast %46 : vector<1x2xf32> to vector<8x2xf32>
    %48 = arith.addf %44, %47 : vector<8x2xf32>
    %c0_38 = arith.constant 0 : index
    %c0_39 = arith.constant 0 : index
    %49 = vector.load %arg6[%c0_38, %c0_39] : memref<8x2xf32, #tpu.memory_space<vmem>>, vector<8x2xf32>
    tpu.vector_store %arg6[%c0_38, %c0_39], %48 {strides = array<i32>} : memref<8x2xf32, #tpu.memory_space<vmem>>, vector<8x2xf32>,
    return
  }
  func.func @transform_0(%arg0: i32) -> i32 {
    %c0_i32 = arith.constant 0 : i32
    %c0_i32_0 = arith.constant 0 : i32
    return %c0_i32 : i32
  }
  func.func @transform_1(%arg0: i32) -> (i32, i32) {
    %c0_i32 = arith.constant 0 : i32
    %c0_i32_0 = arith.constant 0 : i32
    return %arg0, %c0_i32 : i32, i32
  }
  func.func @transform_2(%arg0: i32) -> (i32, i32) {
    %c0_i32 = arith.constant 0 : i32
    %c0_i32_0 = arith.constant 0 : i32
    return %arg0, %c0_i32 : i32, i32
  }
  func.func @transform_3(%arg0: i32) -> (i32, i32, i32) {
    %c0_i32 = arith.constant 0 : i32
    %c0_i32_0 = arith.constant 0 : i32
    %c0_i32_1 = arith.constant 0 : i32
    %c0_i32_2 = arith.constant 0 : i32
    return %c0_i32, %c0_i32_0, %c0_i32_1 : i32, i32, i32
  }
  func.func @transform_4(%arg0: i32) -> (i32, i32, i32) {
    %c0_i32 = arith.constant 0 : i32
    %c0_i32_0 = arith.constant 0 : i32
    %c0_i32_1 = arith.constant 0 : i32
    %c0_i32_2 = arith.constant 0 : i32
    return %c0_i32, %c0_i32_0, %c0_i32_1 : i32, i32, i32
  }
  func.func @transform_5(%arg0: i32) -> (i32, i32) {
    %c0_i32 = arith.constant 0 : i32
    %c0_i32_0 = arith.constant 0 : i32
    return %arg0, %c0_i32 : i32, i32
  }
}

</mosaic_0001>

<llo_original>
// kernel: tpu_custom_call.1
$region0: #{tpu_custom_call.1}
  #allocation0 [shape = 'u32[]', space=smem, size = 0x4, offset = 0x4, fixed_abs, tag = 'smem constant byte address 0x4 - core index']
  #allocation1 [shape = 'u32[144,128]{1,0:T(1,128)}', space=vmem, size = 0x12000, scoped, tag = 'internal scratch']
  %s0 = inlined_call_operand.vmem [shape: f32[3], index: 0, kind: input, shape index: {}]
  %s1 = inlined_call_operand.vmem [shape: f32[8,4], index: 1, kind: input, shape index: {}]
  %s2 = inlined_call_operand.vmem [shape: f32[8,4], index: 2, kind: input, shape index: {}]
  %s3 = inlined_call_operand.hbm [shape: f32[5,32,32], index: 3, kind: input, shape index: {}]
  %s4 = inlined_call_operand.vmem [shape: f32[4,1,32], index: 4, kind: input, shape index: {}]
  %s5 = inlined_call_operand.vmem [shape: f32[8,2], index: 5, kind: output, shape index: {}]
  %s6 = sld [smem:[#allocation0]]
  $region86: #{tpu_custom_call.1} parent=0
    _
  %s8 = ssub.s32 1, %s6
  %s9 = scalar_select 0, %s8, %s6
  $region1: #{tpu_custom_call.1} parent=0
    #allocation2 [shape = 'u8[512]{0}', space=smem, size = 0x200, scoped, tag = 'input window, operand 0, single buffered']
    #allocation3 [shape = 's32[1]{0}', space=sflag, size = 0x4, scoped, tag = 'scoped memory for tpu_custom_call.1']
    #allocation4 [shape = 's32[1]{0}', space=sflag, size = 0x4, scoped, tag = 'scoped memory for tpu_custom_call.1']
    #allocation5 [shape = 'u8[81920]{0}', space=vmem, size = 0x14000, scoped, tag = 'input window, operand 3, single buffered']
    %10 = vsyncpa [#allocation4], 0
    %11 = vsyncpa [#allocation3], 0
    // Predicated region
    $region2: #{tpu_custom_call.1} parent=1 // pred_check
      _
    $region3: #{tpu_custom_call.1} parent=1 // pred_check_branch
      %13 = sbr.rel (0) target = $region5
    $region4: #{tpu_custom_call.1} parent=1 // pred_region
      %s15 = ssub.s32 16, 16
      %16 = vsyncadd [#allocation4], %s15
      %s18 = sshll.u32 %s0, 4
      %s19 = int_to_ptr.vmem [resolvable:$true] %s18
      %21 = dma.vmem_to_smem %s19, 16, [#allocation2], [#allocation4]
    $region5: #{tpu_custom_call.1} parent=1 // pred_fallthru
      _
    // Predicated region
    $region6: #{tpu_custom_call.1} parent=1 // pred_check
      _
    $region7: #{tpu_custom_call.1} parent=1 // pred_check_branch
      %23 = sbr.rel (0) target = $region9
    $region8: #{tpu_custom_call.1} parent=1 // pred_region
      _
    $region9: #{tpu_custom_call.1} parent=1 // pred_fallthru
      _
    // Predicated region
    $region10: #{tpu_custom_call.1} parent=1 // pred_check
      _
    $region11: #{tpu_custom_call.1} parent=1 // pred_check_branch
      %25 = sbr.rel (0) target = $region13
    $region12: #{tpu_custom_call.1} parent=1 // pred_region
      _
    $region13: #{tpu_custom_call.1} parent=1 // pred_fallthru
      _
    // Predicated region
    $region14: #{tpu_custom_call.1} parent=1 // pred_check
      _
    $region15: #{tpu_custom_call.1} parent=1 // pred_check_branch
      %27 = sbr.rel (0) target = $region17
    $region16: #{tpu_custom_call.1} parent=1 // pred_region
      %s29 = ssub.s32 2560, 2560
      %30 = vsyncadd [#allocation3], %s29
      %s31 = sshll.u32 [#allocation5], 4
      %s32 = int_to_ptr.vmem [resolvable:$true] %s31
      %37 = dma.hbm_to_vmem [thread:$0]  %s3, 2560, %s32, [#allocation3], 128, 128, 8
    $region17: #{tpu_custom_call.1} parent=1 // pred_fallthru
      _
    // Predicated region
    $region18: #{tpu_custom_call.1} parent=1 // pred_check
      _
    $region19: #{tpu_custom_call.1} parent=1 // pred_check_branch
      %39 = sbr.rel (0) target = $region21
    $region20: #{tpu_custom_call.1} parent=1 // pred_region
      _
    $region21: #{tpu_custom_call.1} parent=1 // pred_fallthru
      _
    // Predicated region
    $region22: #{tpu_custom_call.1} parent=1 // pred_check
      _
    $region23: #{tpu_custom_call.1} parent=1 // pred_check_branch
      %41 = sbr.rel (0) target = $region25
    $region24: #{tpu_custom_call.1} parent=1 // pred_region
      %42 = dma.done [#allocation4], 16
    $region25: #{tpu_custom_call.1} parent=1 // pred_fallthru
      _
    // Predicated region
    $region26: #{tpu_custom_call.1} parent=1 // pred_check
      _
    $region27: #{tpu_custom_call.1} parent=1 // pred_check_branch
      %44 = sbr.rel (0) target = $region29
    $region28: #{tpu_custom_call.1} parent=1 // pred_region
      %45 = dma.done [#allocation3], 2560
    $region29: #{tpu_custom_call.1} parent=1 // pred_fallthru
      _
    %46 = sfence
    %v47 = vld [vmem:[%s1] sm:$0xff]
    %v48 = vld [vmem:[#allocation5] sm:$0xf]
    %v49 = vld [vmem:[%s2] sm:$0xff]
    %s50 = scalar_lea.vmem [#allocation5], 32
    %v51 = vld [vmem:[%s50] sm:$0xf]
    %vm52 = vcmask 31744
    %v54 = vsel %vm52, %v49, 0
    %vm56 = vcmask 1043456
    %v58 = vsel %vm56, %v51, 0
    %60 = vmatprep.subr.mxu0 0.0
    %61 = vmatpush1.msra.mxu0 0.0
    %62 = vmatprep.subr.mxu0 0.0
    %63 = vmatpush1.msra.mxu0 0.0
    %64 = vmatprep.subr.mxu0 0.0
    %65 = vmatpush1.msra.mxu0 0.0
    %66 = vmatprep.subr.mxu0 0.0
    %67 = vmatpush1.msra.mxu0 0.0
    %68 = vmatprep.subr.mxu0 0.0
    %69 = vmatpush1.msra.mxu0 0.0
    %70 = vmatprep.subr.mxu0 0.0
    %71 = vmatpush1.msra.mxu0 0.0
    %72 = vmatprep.subr.mxu0 0.0
    %73 = vmatpush1.msra.mxu0 0.0
    %74 = vmatprep.subr.mxu0 0.0
    %75 = vmatpush1.msra.mxu0 0.0
    %76 = vmatprep.subr.mxu0 0.0
    %77 = vmatpush1.msra.mxu0 0.0
    %78 = vmatprep.subr.mxu0 0.0
    %79 = vmatpush1.msra.mxu0 0.0
    %80 = vmatprep.subr.mxu0 0.0
    %81 = vmatpush1.msra.mxu0 0.0
    %82 = vmatprep.subr.mxu0 0.0
    %83 = vmatpush1.msra.mxu0 0.0
    %84 = vmatprep.subr.mxu0 0.0
    %85 = vmatpush1.msra.mxu0 0.0
    %86 = vmatprep.subr.mxu0 0.0
    %87 = vmatpush1.msra.mxu0 0.0
    %88 = vmatprep.subr.mxu0 0.0
    %89 = vmatpush1.msra.mxu0 0.0
    %90 = vmatprep.subr.mxu0 0.0
    %91 = vmatpush1.msra.mxu0 %v58
    %92 = vmatprep.subr.mxu0 0.0
    %93 = vmatpush2.msra.mxu0 0.0
    %94 = vmatprep.subr.mxu0 0.0
    %95 = vmatpush2.msra.mxu0 0.0
    %96 = vmatprep.subr.mxu0 0.0
    %97 = vmatpush2.msra.mxu0 0.0
    %98 = vmatprep.subr.mxu0 0.0
    %99 = vmatpush2.msra.mxu0 0.0
    %100 = vmatprep.subr.mxu0 0.0
    %101 = vmatpush2.msra.mxu0 0.0
    %102 = vmatprep.subr.mxu0 0.0
    %103 = vmatpush2.msra.mxu0 0.0
    %104 = vmatprep.subr.mxu0 0.0
    %105 = vmatpush2.msra.mxu0 0.0
    %106 = vmatprep.subr.mxu0 0.0
    %107 = vmatpush2.msra.mxu0 0.0
    %108 = vmatprep.subr.mxu0 0.0
    %109 = vmatpush2.msra.mxu0 0.0
    %110 = vmatprep.subr.mxu0 0.0
    %111 = vmatpush2.msra.mxu0 0.0
    %112 = vmatprep.subr.mxu0 0.0
    %113 = vmatpush2.msra.mxu0 0.0
    %114 = vmatprep.subr.mxu0 0.0
    %115 = vmatpush2.msra.mxu0 0.0
    %116 = vmatprep.subr.mxu0 0.0
    %117 = vmatpush2.msra.mxu0 0.0
    %118 = vmatprep.subr.mxu0 0.0
    %119 = vmatpush2.msra.mxu0 0.0
    %120 = vmatprep.subr.mxu0 0.0
    %121 = vmatpush2.msra.mxu0 0.0
    %122 = vmatprep.subr.mxu0 0.0
    %123 = vmatpush2.msra.mxu0 0.0
    %124 = vmatprep.mubr.f32.mxu0 0.0
    %125 = vmatmul.mubr.f32.gmra.mxu0 %v54
    %v126 = vpop.f32.mrf.mxu0
    %v127 = vadd.f32 0.0, %v126
    %v128 = vpop.f32.mrf.mxu0
    %129 = vdwg.mxu0
    %v131 = vsel %vm52, %v47, 0
    %v134 = vsel %vm56, %v48, 0
    %136 = vmatprep.subr.mxu0 0.0
    %137 = vmatpush1.msra.mxu0 0.0
    %138 = vmatprep.subr.mxu0 0.0
    %139 = vmatpush1.msra.mxu0 0.0
    %140 = vmatprep.subr.mxu0 0.0
    %141 = vmatpush1.msra.mxu0 0.0
    %142 = vmatprep.subr.mxu0 0.0
    %143 = vmatpush1.msra.mxu0 0.0
    %144 = vmatprep.subr.mxu0 0.0
    %145 = vmatpush1.msra.mxu0 0.0
    %146 = vmatprep.subr.mxu0 0.0
    %147 = vmatpush1.msra.mxu0 0.0
    %148 = vmatprep.subr.mxu0 0.0
    %149 = vmatpush1.msra.mxu0 0.0
    %150 = vmatprep.subr.mxu0 0.0
    %151 = vmatpush1.msra.mxu0 0.0
    %152 = vmatprep.subr.mxu0 0.0
    %153 = vmatpush1.msra.mxu0 0.0
    %154 = vmatprep.subr.mxu0 0.0
    %155 = vmatpush1.msra.mxu0 0.0
    %156 = vmatprep.subr.mxu0 0.0
    %157 = vmatpush1.msra.mxu0 0.0
    %158 = vmatprep.subr.mxu0 0.0
    %159 = vmatpush1.msra.mxu0 0.0
    %160 = vmatprep.subr.mxu0 0.0
    %161 = vmatpush1.msra.mxu0 0.0
    %162 = vmatprep.subr.mxu0 0.0
    %163 = vmatpush1.msra.mxu0 0.0
    %164 = vmatprep.subr.mxu0 0.0
    %165 = vmatpush1.msra.mxu0 0.0
    %166 = vmatprep.subr.mxu0 0.0
    %167 = vmatpush1.msra.mxu0 %v134
    %168 = vmatprep.subr.mxu0 0.0
    %169 = vmatpush2.msra.mxu0 0.0
    %170 = vmatprep.subr.mxu0 0.0
    %171 = vmatpush2.msra.mxu0 0.0
    %172 = vmatprep.subr.mxu0 0.0
    %173 = vmatpush2.msra.mxu0 0.0
    %174 = vmatprep.subr.mxu0 0.0
    %175 = vmatpush2.msra.mxu0 0.0
    %176 = vmatprep.subr.mxu0 0.0
    %177 = vmatpush2.msra.mxu0 0.0
    %178 = vmatprep.subr.mxu0 0.0
    %179 = vmatpush2.msra.mxu0 0.0
    %180 = vmatprep.subr.mxu0 0.0
    %181 = vmatpush2.msra.mxu0 0.0
    %182 = vmatprep.subr.mxu0 0.0
    %183 = vmatpush2.msra.mxu0 0.0
    %184 = vmatprep.subr.mxu0 0.0
    %185 = vmatpush2.msra.mxu0 0.0
    %186 = vmatprep.subr.mxu0 0.0
    %187 = vmatpush2.msra.mxu0 0.0
    %188 = vmatprep.subr.mxu0 0.0
    %189 = vmatpush2.msra.mxu0 0.0
    %190 = vmatprep.subr.mxu0 0.0
    %191 = vmatpush2.msra.mxu0 0.0
    %192 = vmatprep.subr.mxu0 0.0
    %193 = vmatpush2.msra.mxu0 0.0
    %194 = vmatprep.subr.mxu0 0.0
    %195 = vmatpush2.msra.mxu0 0.0
    %196 = vmatprep.subr.mxu0 0.0
    %197 = vmatpush2.msra.mxu0 0.0
    %198 = vmatprep.subr.mxu0 0.0
    %199 = vmatpush2.msra.mxu0 0.0
    %200 = vmatprep.mubr.f32.mxu0 0.0
    %201 = vmatmul.mubr.f32.gmra.mxu0 %v131
    %v202 = vpop.f32.mrf.mxu0
    %v203 = vadd.f32 %v127, %v202
    %v204 = vpop.f32.mrf.mxu0
    %205 = vdwg.mxu0
    %v206 = vld [vmem:[%s4] sm:$0x1]
    %v208 = vlaneseq
    %v209 = vshrl.u32 %v208, 7
    %v210 = vsub.s32 0, %v209
    %v211 = vrot.slane %v206, %v210
    %v213 = vadd.f32 %v203, %v211
    %s214 = sld [smem:[#allocation2]]
    %p215 = scmp.eq.f32.partialorder %s214, 0.0
    // Predicated region
    $region30: #{tpu_custom_call.1} parent=1 // pred_check
      %p216 = pneg %p215
    $region31: #{tpu_custom_call.1} parent=1 // pred_check_branch
      %218 = sbr.rel (%p216) target = $region33
    $region32: #{tpu_custom_call.1} parent=1 // pred_region
      _
    $region33: #{tpu_custom_call.1} parent=1 // pred_fallthru
      _
    %p219 = pneg %p215
    // Predicated region
    $region34: #{tpu_custom_call.1} parent=1 // pred_check
      _
    $region35: #{tpu_custom_call.1} parent=1 // pred_check_branch
      %221 = sbr.rel (%p215) target = $region37
    $region36: #{tpu_custom_call.1} parent=1 // pred_region
      %p222 = scmp.lt.f32.partialorder %s214, 0.0
      // Predicated region
      $region38: #{tpu_custom_call.1} parent=36 // pred_check
        %p223 = pneg %p222
      $region39: #{tpu_custom_call.1} parent=36 // pred_check_branch
        %225 = sbr.rel (%p223) target = $region41
      $region40: #{tpu_custom_call.1} parent=36 // pred_region
        %v226 = vstv %s214
        %v227 = vrcp.pop %v226
        %s228 = vtos %v227
        %v229 = vstv %s214
        %v230 = vadd.f32 %v213, %v229
        %v231 = vmul.f32 %v229, %v230
        %v232 = vsub.f32 1.0, %v231
        %v233 = vmax.f32 %v232, 1e-30
        %v234 = vlog2.pop %v233
        %v235 = vmul.f32 %v234, 0.6931472
        %v236 = vsub.f32 0.0, %v235
        %v237 = vstv %s228
        %v238 = vmul.f32 %v236, %v237
      $region41: #{tpu_custom_call.1} parent=36 // pred_fallthru
        %v239 = vphi 0, %v238
      %p240 = pneg %p222
      // Predicated region
      $region42: #{tpu_custom_call.1} parent=36 // pred_check
        _
      $region43: #{tpu_custom_call.1} parent=36 // pred_check_branch
        %242 = sbr.rel (%p222) target = $region45
      $region44: #{tpu_custom_call.1} parent=36 // pred_region
        %v243 = vstv %s214
        %v244 = vrcp.pop %v243
        %s245 = vtos %v244
        %v246 = vstv %s214
        %v247 = vmul.f32 %v246, %v213
        %v248 = vmul.f32 %v247, 1.442695
        %v249 = vpow.pop %v248
        %v250 = vsub.f32 %v249, 1.0
        %v251 = vstv %s245
        %v252 = vmul.f32 %v250, %v251
        %v253 = vadd.f32 %v252, %v246
      $region45: #{tpu_custom_call.1} parent=36 // pred_fallthru
        %v254 = vphi %v239, %v253
    $region37: #{tpu_custom_call.1} parent=1 // pred_fallthru
      %v255 = vphi %v213, %v254
    %s256 = scalar_lea.vmem [#allocation5], 64
    %v257 = vld [vmem:[%s256] sm:$0xff]
    %v258 = vld [vmem:[%s256 + $0x8] sm:$0xff]
    %v259 = vld [vmem:[%s256 + $0x10] sm:$0xff]
    %v260 = vld [vmem:[%s256 + $0x18] sm:$0xff]
    %s261 = scalar_lea.vmem %s4, 1
    %v262 = vld [vmem:[%s261] sm:$0x1]
    %v264 = vlaneseq
    %v265 = vshrl.u32 %v264, 7
    %v266 = vsub.s32 0, %v265
    %v267 = vrot.slane %v262, %v266
    %vm269 = vcmask 261120
    %v271 = vsel %vm269, %v255, 0
    %273 = vmatprep.subr.mxu0 0.0
    %274 = vmatpush1.msra.mxu0 0.0
    %275 = vmatprep.subr.mxu0 0.0
    %276 = vmatpush1.msra.mxu0 0.0
    %277 = vmatprep.subr.mxu0 0.0
    %278 = vmatpush1.msra.mxu0 0.0
    %279 = vmatprep.subr.mxu0 0.0
    %280 = vmatpush1.msra.mxu0 0.0
    %281 = vmatprep.subr.mxu0 0.0
    %282 = vmatpush1.msra.mxu0 0.0
    %283 = vmatprep.subr.mxu0 0.0
    %284 = vmatpush1.msra.mxu0 0.0
    %285 = vmatprep.subr.mxu0 0.0
    %286 = vmatpush1.msra.mxu0 0.0
    %287 = vmatprep.subr.mxu0 0.0
    %288 = vmatpush1.msra.mxu0 0.0
    %289 = vmatprep.subr.mxu0 0.0
    %290 = vmatpush1.msra.mxu0 0.0
    %291 = vmatprep.subr.mxu0 0.0
    %292 = vmatpush1.msra.mxu0 0.0
    %293 = vmatprep.subr.mxu0 0.0
    %294 = vmatpush1.msra.mxu0 0.0
    %295 = vmatprep.subr.mxu0 0.0
    %296 = vmatpush1.msra.mxu0 0.0
    %297 = vmatprep.subr.mxu0 0.0
    %298 = vmatpush1.msra.mxu0 %v260
    %299 = vmatprep.subr.mxu0 0.0
    %300 = vmatpush1.msra.mxu0 %v259
    %301 = vmatprep.subr.mxu0 0.0
    %302 = vmatpush1.msra.mxu0 %v258
    %303 = vmatprep.subr.mxu0 0.0
    %304 = vmatpush1.msra.mxu0 %v257
    %305 = vmatprep.subr.mxu0 0.0
    %306 = vmatpush2.msra.mxu0 0.0
    %307 = vmatprep.subr.mxu0 0.0
    %308 = vmatpush2.msra.mxu0 0.0
    %309 = vmatprep.subr.mxu0 0.0
    %310 = vmatpush2.msra.mxu0 0.0
    %311 = vmatprep.subr.mxu0 0.0
    %312 = vmatpush2.msra.mxu0 0.0
    %313 = vmatprep.subr.mxu0 0.0
    %314 = vmatpush2.msra.mxu0 0.0
    %315 = vmatprep.subr.mxu0 0.0
    %316 = vmatpush2.msra.mxu0 0.0
    %317 = vmatprep.subr.mxu0 0.0
    %318 = vmatpush2.msra.mxu0 0.0
    %319 = vmatprep.subr.mxu0 0.0
    %320 = vmatpush2.msra.mxu0 0.0
    %321 = vmatprep.subr.mxu0 0.0
    %322 = vmatpush2.msra.mxu0 0.0
    %323 = vmatprep.subr.mxu0 0.0
    %324 = vmatpush2.msra.mxu0 0.0
    %325 = vmatprep.subr.mxu0 0.0
    %326 = vmatpush2.msra.mxu0 0.0
    %327 = vmatprep.subr.mxu0 0.0
    %328 = vmatpush2.msra.mxu0 0.0
    %329 = vmatprep.subr.mxu0 0.0
    %330 = vmatpush2.msra.mxu0 0.0
    %331 = vmatprep.subr.mxu0 0.0
    %332 = vmatpush2.msra.mxu0 0.0
    %333 = vmatprep.subr.mxu0 0.0
    %334 = vmatpush2.msra.mxu0 0.0
    %335 = vmatprep.subr.mxu0 0.0
    %336 = vmatpush2.msra.mxu0 0.0
    %337 = vmatprep.mubr.f32.mxu0 0.0
    %338 = vmatmul.mubr.f32.gmra.mxu0 %v271
    %v339 = vpop.f32.mrf.mxu0
    %v340 = vadd.f32 %v267, %v339
    %v341 = vpop.f32.mrf.mxu0
    %342 = vdwg.mxu0
    %s343 = sld [smem:[#allocation2 + $0x1]]
    %p344 = scmp.eq.f32.partialorder %s343, 0.0
    // Predicated region
    $region46: #{tpu_custom_call.1} parent=1 // pred_check
      %p345 = pneg %p344
    $region47: #{tpu_custom_call.1} parent=1 // pred_check_branch
      %347 = sbr.rel (%p345) target = $region49
    $region48: #{tpu_custom_call.1} parent=1 // pred_region
      _
    $region49: #{tpu_custom_call.1} parent=1 // pred_fallthru
      _
    %p348 = pneg %p344
    // Predicated region
    $region50: #{tpu_custom_call.1} parent=1 // pred_check
      _
    $region51: #{tpu_custom_call.1} parent=1 // pred_check_branch
      %350 = sbr.rel (%p344) target = $region53
    $region52: #{tpu_custom_call.1} parent=1 // pred_region
      %p351 = scmp.lt.f32.partialorder %s343, 0.0
      // Predicated region
      $region54: #{tpu_custom_call.1} parent=52 // pred_check
        %p352 = pneg %p351
      $region55: #{tpu_custom_call.1} parent=52 // pred_check_branch
        %354 = sbr.rel (%p352) target = $region57
      $region56: #{tpu_custom_call.1} parent=52 // pred_region
        %v355 = vstv %s343
        %v356 = vrcp.pop %v355
        %s357 = vtos %v356
        %v358 = vstv %s343
        %v359 = vadd.f32 %v340, %v358
        %v360 = vmul.f32 %v358, %v359
        %v361 = vsub.f32 1.0, %v360
        %v362 = vmax.f32 %v361, 1e-30
        %v363 = vlog2.pop %v362
        %v364 = vmul.f32 %v363, 0.6931472
        %v365 = vsub.f32 0.0, %v364
        %v366 = vstv %s357
        %v367 = vmul.f32 %v365, %v366
      $region57: #{tpu_custom_call.1} parent=52 // pred_fallthru
        %v368 = vphi 0, %v367
      %p369 = pneg %p351
      // Predicated region
      $region58: #{tpu_custom_call.1} parent=52 // pred_check
        _
      $region59: #{tpu_custom_call.1} parent=52 // pred_check_branch
        %371 = sbr.rel (%p351) target = $region61
      $region60: #{tpu_custom_call.1} parent=52 // pred_region
        %v372 = vstv %s343
        %v373 = vrcp.pop %v372
        %s374 = vtos %v373
        %v375 = vstv %s343
        %v376 = vmul.f32 %v375, %v340
        %v377 = vmul.f32 %v376, 1.442695
        %v378 = vpow.pop %v377
        %v379 = vsub.f32 %v378, 1.0
        %v380 = vstv %s374
        %v381 = vmul.f32 %v379, %v380
        %v382 = vadd.f32 %v381, %v375
      $region61: #{tpu_custom_call.1} parent=52 // pred_fallthru
        %v383 = vphi %v368, %v382
    $region53: #{tpu_custom_call.1} parent=1 // pred_fallthru
      %v384 = vphi %v340, %v383
    %s385 = scalar_lea.vmem [#allocation5], 96
    %v386 = vld [vmem:[%s385] sm:$0xff]
    %v387 = vld [vmem:[%s385 + $0x8] sm:$0xff]
    %v388 = vld [vmem:[%s385 + $0x10] sm:$0xff]
    %v389 = vld [vmem:[%s385 + $0x18] sm:$0xff]
    %s390 = scalar_lea.vmem %s4, 2
    %v391 = vld [vmem:[%s390] sm:$0x1]
    %v393 = vlaneseq
    %v394 = vshrl.u32 %v393, 7
    %v395 = vsub.s32 0, %v394
    %v396 = vrot.slane %v391, %v395
    %v399 = vsel %vm269, %v384, 0
    %401 = vmatprep.subr.mxu0 0.0
    %402 = vmatpush1.msra.mxu0 0.0
    %403 = vmatprep.subr.mxu0 0.0
    %404 = vmatpush1.msra.mxu0 0.0
    %405 = vmatprep.subr.mxu0 0.0
    %406 = vmatpush1.msra.mxu0 0.0
    %407 = vmatprep.subr.mxu0 0.0
    %408 = vmatpush1.msra.mxu0 0.0
    %409 = vmatprep.subr.mxu0 0.0
    %410 = vmatpush1.msra.mxu0 0.0
    %411 = vmatprep.subr.mxu0 0.0
    %412 = vmatpush1.msra.mxu0 0.0
    %413 = vmatprep.subr.mxu0 0.0
    %414 = vmatpush1.msra.mxu0 0.0
    %415 = vmatprep.subr.mxu0 0.0
    %416 = vmatpush1.msra.mxu0 0.0
    %417 = vmatprep.subr.mxu0 0.0
    %418 = vmatpush1.msra.mxu0 0.0
    %419 = vmatprep.subr.mxu0 0.0
    %420 = vmatpush1.msra.mxu0 0.0
    %421 = vmatprep.subr.mxu0 0.0
    %422 = vmatpush1.msra.mxu0 0.0
    %423 = vmatprep.subr.mxu0 0.0
    %424 = vmatpush1.msra.mxu0 0.0
    %425 = vmatprep.subr.mxu0 0.0
    %426 = vmatpush1.msra.mxu0 %v389
    %427 = vmatprep.subr.mxu0 0.0
    %428 = vmatpush1.msra.mxu0 %v388
    %429 = vmatprep.subr.mxu0 0.0
    %430 = vmatpush1.msra.mxu0 %v387
    %431 = vmatprep.subr.mxu0 0.0
    %432 = vmatpush1.msra.mxu0 %v386
    %433 = vmatprep.subr.mxu0 0.0
    %434 = vmatpush2.msra.mxu0 0.0
    %435 = vmatprep.subr.mxu0 0.0
    %436 = vmatpush2.msra.mxu0 0.0
    %437 = vmatprep.subr.mxu0 0.0
    %438 = vmatpush2.msra.mxu0 0.0
    %439 = vmatprep.subr.mxu0 0.0
    %440 = vmatpush2.msra.mxu0 0.0
    %441 = vmatprep.subr.mxu0 0.0
    %442 = vmatpush2.msra.mxu0 0.0
    %443 = vmatprep.subr.mxu0 0.0
    %444 = vmatpush2.msra.mxu0 0.0
    %445 = vmatprep.subr.mxu0 0.0
    %446 = vmatpush2.msra.mxu0 0.0
    %447 = vmatprep.subr.mxu0 0.0
    %448 = vmatpush2.msra.mxu0 0.0
    %449 = vmatprep.subr.mxu0 0.0
    %450 = vmatpush2.msra.mxu0 0.0
    %451 = vmatprep.subr.mxu0 0.0
    %452 = vmatpush2.msra.mxu0 0.0
    %453 = vmatprep.subr.mxu0 0.0
    %454 = vmatpush2.msra.mxu0 0.0
    %455 = vmatprep.subr.mxu0 0.0
    %456 = vmatpush2.msra.mxu0 0.0
    %457 = vmatprep.subr.mxu0 0.0
    %458 = vmatpush2.msra.mxu0 0.0
    %459 = vmatprep.subr.mxu0 0.0
    %460 = vmatpush2.msra.mxu0 0.0
    %461 = vmatprep.subr.mxu0 0.0
    %462 = vmatpush2.msra.mxu0 0.0
    %463 = vmatprep.subr.mxu0 0.0
    %464 = vmatpush2.msra.mxu0 0.0
    %465 = vmatprep.mubr.f32.mxu0 0.0
    %466 = vmatmul.mubr.f32.gmra.mxu0 %v399
    %v467 = vpop.f32.mrf.mxu0
    %v468 = vadd.f32 %v396, %v467
    %v469 = vpop.f32.mrf.mxu0
    %470 = vdwg.mxu0
    %s471 = sld [smem:[#allocation2 + $0x2]]
    %p472 = scmp.eq.f32.partialorder %s471, 0.0
    // Predicated region
    $region62: #{tpu_custom_call.1} parent=1 // pred_check
      %p473 = pneg %p472
    $region63: #{tpu_custom_call.1} parent=1 // pred_check_branch
      %475 = sbr.rel (%p473) target = $region65
    $region64: #{tpu_custom_call.1} parent=1 // pred_region
      _
    $region65: #{tpu_custom_call.1} parent=1 // pred_fallthru
      _
    %p476 = pneg %p472
    // Predicated region
    $region66: #{tpu_custom_call.1} parent=1 // pred_check
      _
    $region67: #{tpu_custom_call.1} parent=1 // pred_check_branch
      %478 = sbr.rel (%p472) target = $region69
    $region68: #{tpu_custom_call.1} parent=1 // pred_region
      %p479 = scmp.lt.f32.partialorder %s471, 0.0
      // Predicated region
      $region70: #{tpu_custom_call.1} parent=68 // pred_check
        %p480 = pneg %p479
      $region71: #{tpu_custom_call.1} parent=68 // pred_check_branch
        %482 = sbr.rel (%p480) target = $region73
      $region72: #{tpu_custom_call.1} parent=68 // pred_region
        %v483 = vstv %s471
        %v484 = vrcp.pop %v483
        %s485 = vtos %v484
        %v486 = vstv %s471
        %v487 = vadd.f32 %v468, %v486
        %v488 = vmul.f32 %v486, %v487
        %v489 = vsub.f32 1.0, %v488
        %v490 = vmax.f32 %v489, 1e-30
        %v491 = vlog2.pop %v490
        %v492 = vmul.f32 %v491, 0.6931472
        %v493 = vsub.f32 0.0, %v492
        %v494 = vstv %s485
        %v495 = vmul.f32 %v493, %v494
      $region73: #{tpu_custom_call.1} parent=68 // pred_fallthru
        %v496 = vphi 0, %v495
      %p497 = pneg %p479
      // Predicated region
      $region74: #{tpu_custom_call.1} parent=68 // pred_check
        _
      $region75: #{tpu_custom_call.1} parent=68 // pred_check_branch
        %499 = sbr.rel (%p479) target = $region77
      $region76: #{tpu_custom_call.1} parent=68 // pred_region
        %v500 = vstv %s471
        %v501 = vrcp.pop %v500
        %s502 = vtos %v501
        %v503 = vstv %s471
        %v504 = vmul.f32 %v503, %v468
        %v505 = vmul.f32 %v504, 1.442695
        %v506 = vpow.pop %v505
        %v507 = vsub.f32 %v506, 1.0
        %v508 = vstv %s502
        %v509 = vmul.f32 %v507, %v508
        %v510 = vadd.f32 %v509, %v503
      $region77: #{tpu_custom_call.1} parent=68 // pred_fallthru
        %v511 = vphi %v496, %v510
    $region69: #{tpu_custom_call.1} parent=1 // pred_fallthru
      %v512 = vphi %v468, %v511
    %s513 = scalar_lea.vmem [#allocation5], 128
    %v514 = vld [vmem:[%s513] sm:$0xff]
    %v515 = vld [vmem:[%s513 + $0x8] sm:$0xff]
    %v516 = vld [vmem:[%s513 + $0x10] sm:$0xff]
    %v517 = vld [vmem:[%s513 + $0x18] sm:$0xff]
    %s518 = scalar_lea.vmem %s4, 3
    %v519 = vld [vmem:[%s518] sm:$0x1]
    %v521 = vlaneseq
    %v522 = vshrl.u32 %v521, 7
    %v523 = vsub.s32 0, %v522
    %v524 = vrot.slane %v519, %v523
    %v527 = vsel %vm269, %v512, 0
    %529 = vmatprep.subr.mxu0 0.0
    %530 = vmatpush1.msra.mxu0 0.0
    %531 = vmatprep.subr.mxu0 0.0
    %532 = vmatpush1.msra.mxu0 0.0
    %533 = vmatprep.subr.mxu0 0.0
    %534 = vmatpush1.msra.mxu0 0.0
    %535 = vmatprep.subr.mxu0 0.0
    %536 = vmatpush1.msra.mxu0 0.0
    %537 = vmatprep.subr.mxu0 0.0
    %538 = vmatpush1.msra.mxu0 0.0
    %539 = vmatprep.subr.mxu0 0.0
    %540 = vmatpush1.msra.mxu0 0.0
    %541 = vmatprep.subr.mxu0 0.0
    %542 = vmatpush1.msra.mxu0 0.0
    %543 = vmatprep.subr.mxu0 0.0
    %544 = vmatpush1.msra.mxu0 0.0
    %545 = vmatprep.subr.mxu0 0.0
    %546 = vmatpush1.msra.mxu0 0.0
    %547 = vmatprep.subr.mxu0 0.0
    %548 = vmatpush1.msra.mxu0 0.0
    %549 = vmatprep.subr.mxu0 0.0
    %550 = vmatpush1.msra.mxu0 0.0
    %551 = vmatprep.subr.mxu0 0.0
    %552 = vmatpush1.msra.mxu0 0.0
    %553 = vmatprep.subr.mxu0 0.0
    %554 = vmatpush1.msra.mxu0 %v517
    %555 = vmatprep.subr.mxu0 0.0
    %556 = vmatpush1.msra.mxu0 %v516
    %557 = vmatprep.subr.mxu0 0.0
    %558 = vmatpush1.msra.mxu0 %v515
    %559 = vmatprep.subr.mxu0 0.0
    %560 = vmatpush1.msra.mxu0 %v514
    %561 = vmatprep.subr.mxu0 0.0
    %562 = vmatpush2.msra.mxu0 0.0
    %563 = vmatprep.subr.mxu0 0.0
    %564 = vmatpush2.msra.mxu0 0.0
    %565 = vmatprep.subr.mxu0 0.0
    %566 = vmatpush2.msra.mxu0 0.0
    %567 = vmatprep.subr.mxu0 0.0
    %568 = vmatpush2.msra.mxu0 0.0
    %569 = vmatprep.subr.mxu0 0.0
    %570 = vmatpush2.msra.mxu0 0.0
    %571 = vmatprep.subr.mxu0 0.0
    %572 = vmatpush2.msra.mxu0 0.0
    %573 = vmatprep.subr.mxu0 0.0
    %574 = vmatpush2.msra.mxu0 0.0
    %575 = vmatprep.subr.mxu0 0.0
    %576 = vmatpush2.msra.mxu0 0.0
    %577 = vmatprep.subr.mxu0 0.0
    %578 = vmatpush2.msra.mxu0 0.0
    %579 = vmatprep.subr.mxu0 0.0
    %580 = vmatpush2.msra.mxu0 0.0
    %581 = vmatprep.subr.mxu0 0.0
    %582 = vmatpush2.msra.mxu0 0.0
    %583 = vmatprep.subr.mxu0 0.0
    %584 = vmatpush2.msra.mxu0 0.0
    %585 = vmatprep.subr.mxu0 0.0
    %586 = vmatpush2.msra.mxu0 0.0
    %587 = vmatprep.subr.mxu0 0.0
    %588 = vmatpush2.msra.mxu0 0.0
    %589 = vmatprep.subr.mxu0 0.0
    %590 = vmatpush2.msra.mxu0 0.0
    %591 = vmatprep.subr.mxu0 0.0
    %592 = vmatpush2.msra.mxu0 0.0
    %593 = vmatprep.mubr.f32.mxu0 0.0
    %594 = vmatmul.mubr.f32.gmra.mxu0 %v527
    %v595 = vpop.f32.mrf.mxu0
    %v596 = vadd.f32 %v524, %v595
    %v597 = vpop.f32.mrf.mxu0
    %598 = vdwg.mxu0
    %vm599 = vcmask 15360
    %600 = vst.msk [vmem:[%s5] sm:$0xff] %vm599, %v596
    // Predicated region
    $region78: #{tpu_custom_call.1} parent=1 // pred_check
      _
    $region79: #{tpu_custom_call.1} parent=1 // pred_check_branch
      %602 = sbr.rel (0) target = $region81
    $region80: #{tpu_custom_call.1} parent=1 // pred_region
      _
    $region81: #{tpu_custom_call.1} parent=1 // pred_fallthru
      _
    // Predicated region
    $region82: #{tpu_custom_call.1} parent=1 // pred_check
      _
    $region83: #{tpu_custom_call.1} parent=1 // pred_check_branch
      %604 = sbr.rel (0) target = $region85
    $region84: #{tpu_custom_call.1} parent=1 // pred_region
      _
    $region85: #{tpu_custom_call.1} parent=1 // pred_fallthru
      _
    %605 = vsyncpa [#allocation3], 1
    %606 = vsyncpa [#allocation4], 1

</llo_original>
